<compile_context>
chip_gen: v6e
topology: v6e:2x2x1
jax: 0.10.0
libtpu: 0.0.40
codegen_flags: <defaults>
</compile_context>

<pallas_src>
import jax
import jax.numpy as jnp
from jax.experimental import pallas as pl
from jax.experimental.pallas import tpu as pltpu


def _logreg_kernel(x_ref, w_ref, b_ref, o_ref):
    # x_ref: (TN, ft_in); w_ref: (ft_in, C) pre-transposed in the wrapper;
    # b_ref: (1, C).  MXU matmul with f32 accumulation.
    acc = jnp.dot(x_ref[...], w_ref[...], preferred_element_type=jnp.float32)
    o_ref[...] = (acc + b_ref[...].astype(jnp.float32)).astype(o_ref.dtype)


def _round_up(v, m):
    return ((v + m - 1) // m) * m


_TARGET_X_BYTES = 4 * 1024 * 1024   # ~4 MiB x blocks: >=85% of HBM roofline
_VMEM_BUDGET = 24 * 1024 * 1024     # tile budget: fits v7x's 64 MiB/TC VMEM
_VMEM_LIMIT = 32 * 1024 * 1024      # scoped-VMEM limit (above v5e's 16 MiB default)


def _choose_tile_rows(n_rows, ft_in, out_cols, in_itemsize, out_itemsize):
    # Sublane multiple for the input dtype (8 for f32, 16 for bf16, 32 for int8).
    sublane = max(8, 32 // max(1, in_itemsize))

    row_bytes = max(1, ft_in * in_itemsize)
    tn = max(sublane, (_TARGET_X_BYTES // row_bytes) // sublane * sublane)
    tn = min(tn, _round_up(n_rows, sublane))

    # Keep 2x double-buffered x/out blocks (+ resident weight/bias) in budget.
    fixed = 2 * (ft_in * out_cols + out_cols) * in_itemsize
    per_row = 2 * (ft_in * in_itemsize + out_cols * out_itemsize)
    cap = max(sublane, ((_VMEM_BUDGET - fixed) // per_row) // sublane * sublane)
    tn = min(tn, cap)

    # Megacore: make the "parallel" row axis at least 2 steps when possible so
    # v7x (2 TCs/chip) splits the grid; on 1-TC chips this adds ~0.35us once.
    if pl.cdiv(n_rows, tn) < 2 and n_rows >= 2 * sublane:
        tn = _round_up(pl.cdiv(n_rows, 2), sublane)

    return max(sublane, tn)


def logreg_forward(seq, weight, bias, *, tile_rows=None):
    """nn.Linear forward: seq @ weight.T + bias.

    seq: [..., ft_in]; weight: [nb_classes, ft_in] (PyTorch layout); bias: [nb_classes].
    """
    orig_shape = seq.shape
    ft_in = orig_shape[-1]
    nb_classes, ft_in_w = weight.shape
    assert ft_in_w == ft_in, "weight must be [nb_classes, ft_in]"

    x = seq.reshape(-1, ft_in)
    n_rows = x.shape[0]
    out_dtype = seq.dtype

    # One-time tiny wrapper-side transform: canonical [K, N] feed for the MXU.
    w_t = jnp.transpose(weight).astype(out_dtype)           # [ft_in, nb_classes]
    b2 = bias.reshape(1, nb_classes).astype(out_dtype)      # [1, nb_classes]

    # Lane-dense output only when the input read dominates traffic.
    pad_cols = (ft_in >= 512) and (nb_classes % 128 != 0)
    out_cols = _round_up(nb_classes, 128) if pad_cols else nb_classes
    if pad_cols:
        w_t = jnp.pad(w_t, ((0, 0), (0, out_cols - nb_classes)))
        b2 = jnp.pad(b2, ((0, 0), (0, out_cols - nb_classes)))

    in_itemsize = jnp.dtype(x.dtype).itemsize
    out_itemsize = jnp.dtype(out_dtype).itemsize
    if tile_rows is None:
        tile_rows = _choose_tile_rows(n_rows, ft_in, out_cols, in_itemsize, out_itemsize)
    grid_rows = pl.cdiv(n_rows, tile_rows)

    cost = pl.CostEstimate(
        flops=2 * n_rows * ft_in * out_cols,
        transcendentals=0,
        bytes_accessed=in_itemsize * (n_rows * ft_in + ft_in * out_cols + out_cols)
        + out_itemsize * n_rows * out_cols,
    )

    out = pl.pallas_call(
        _logreg_kernel,
        out_shape=jax.ShapeDtypeStruct((n_rows, out_cols), out_dtype),
        grid_spec=pl.GridSpec(
            grid=(grid_rows,),
            in_specs=[
                pl.BlockSpec((tile_rows, ft_in), lambda i: (i, 0)),   # x tile (pipelined)
                pl.BlockSpec((ft_in, out_cols), lambda i: (0, 0)),    # weight (grid-invariant)
                pl.BlockSpec((1, out_cols), lambda i: (0, 0)),        # bias   (grid-invariant)
            ],
            out_specs=pl.BlockSpec((tile_rows, out_cols), lambda i: (i, 0)),
        ),
        compiler_params=pltpu.CompilerParams(
            dimension_semantics=("parallel",),
            vmem_limit_bytes=_VMEM_LIMIT,
        ),
        cost_estimate=cost,
    )(x, w_t, b2)

    if pad_cols:
        out = out[:, :nb_classes]
    return out.reshape(*orig_shape[:-1], nb_classes)


def _xavier_uniform(key, shape, dtype=jnp.float32):
    # matches torch.nn.init.xavier_uniform_ for a Linear weight [out, in]
    fan_out, fan_in = shape
    limit = (6.0 / (fan_in + fan_out)) ** 0.5
    return jax.random.uniform(key, shape, dtype, minval=-limit, maxval=limit)


if __name__ == "__main__":
    key = jax.random.PRNGKey(0)
    k1, k2, k3, k4, k5 = jax.random.split(key, 5)

    # Case 1: tiny shapes consistent with LogReg (single tile).
    N, ft_in, nb_classes = 8, 32, 16
    seq = jax.random.normal(k1, (N, ft_in), dtype=jnp.float32)
    weight = _xavier_uniform(k2, (nb_classes, ft_in))     # PyTorch layout [out, in]
    bias = jnp.zeros((nb_classes,), dtype=jnp.float32)    # bias.data.fill_(0.0)

    out = jax.block_until_ready(logreg_forward(seq, weight, bias))
    ref = jnp.dot(seq, weight.T, precision=jax.lax.Precision.HIGHEST) + bias
    assert out.shape == (N, nb_classes)
    assert jnp.allclose(out, ref, atol=5e-3, rtol=5e-3)

    # Case 2: row count not a multiple of the tile/sublane -> partial final block,
    # no wrapper-side padding copy, 2-step "parallel" grid.
    N2 = 203
    seq2 = jax.random.normal(k3, (N2, ft_in), dtype=jnp.float32)
    out2 = jax.block_until_ready(logreg_forward(seq2, weight, bias))
    ref2 = jnp.dot(seq2, weight.T, precision=jax.lax.Precision.HIGHEST) + bias
    assert out2.shape == (N2, nb_classes)
    assert jnp.allclose(out2, ref2, atol=5e-3, rtol=5e-3)

    # Case 3: large ft_in -> lane-dense (128-padded) output path.
    N3, ft3, c3 = 64, 512, 16
    seq3 = jax.random.normal(k4, (N3, ft3), dtype=jnp.float32)
    weight3 = _xavier_uniform(k5, (c3, ft3))
    bias3 = jnp.zeros((c3,), dtype=jnp.float32)
    out3 = jax.block_until_ready(logreg_forward(seq3, weight3, bias3))
    ref3 = jnp.dot(seq3, weight3.T, precision=jax.lax.Precision.HIGHEST) + bias3
    assert out3.shape == (N3, c3)
    assert jnp.allclose(out3, ref3, atol=5e-3, rtol=5e-3)

    print("KERNEL_OK")
</pallas_src>

<mosaic_0001>
module attributes {stable_mosaic.version = 11 : i64} {
  func.func @_logreg_kernel(%arg0: i32, %arg1: memref<8x32xf32, #tpu.memory_space<vmem>>, %arg2: memref<32x16xf32, #tpu.memory_space<vmem>>, %arg3: memref<1x16xf32, #tpu.memory_space<vmem>>, %arg4: memref<8x16xf32, #tpu.memory_space<vmem>>) attributes {dimension_semantics = [#tpu.dimension_semantics<parallel>], iteration_bounds = array<i64: 1>, scalar_prefetch = 0 : i64, scratch_operands = 0 : i64, tpu.core_type = #tpu.core_type<tc>, window_params = [{transform_indices = @transform_0, window_bounds = array<i64: 8, 32>}, {pipeline_mode = #tpu.pipeline_mode<synchronous>, transform_indices = @transform_1, window_bounds = array<i64: 32, 16>}, {pipeline_mode = #tpu.pipeline_mode<synchronous>, transform_indices = @transform_2, window_bounds = array<i64: 1, 16>}, {transform_indices = @transform_3, window_bounds = array<i64: 8, 16>}]} {
    %c0 = arith.constant 0 : index
    %c0_0 = arith.constant 0 : index
    %0 = vector.load %arg1[%c0, %c0_0] : memref<8x32xf32, #tpu.memory_space<vmem>>, vector<8x32xf32>
    %c0_1 = arith.constant 0 : index
    %c0_2 = arith.constant 0 : index
    %1 = vector.load %arg2[%c0_1, %c0_2] : memref<32x16xf32, #tpu.memory_space<vmem>>, vector<32x16xf32>
    %cst = arith.constant dense<0.000000e+00> : vector<8x16xf32>
    %2 = tpu.matmul %0, %1, %cst {dimension_numbers = #tpu.dot_dimension_numbers<[1], [0], [0], [1], [0, 0, 1, 1], [], []>} : vector<8x32xf32>, vector<32x16xf32>, vector<8x16xf32> -> vector<8x16xf32>
    %c0_3 = arith.constant 0 : index
    %c0_4 = arith.constant 0 : index
    %3 = vector.load %arg3[%c0_3, %c0_4] : memref<1x16xf32, #tpu.memory_space<vmem>>, vector<1x16xf32>
    %4 = vector.broadcast %3 : vector<1x16xf32> to vector<8x16xf32>
    %5 = arith.addf %2, %4 : vector<8x16xf32>
    %c0_5 = arith.constant 0 : index
    %c0_6 = arith.constant 0 : index
    %6 = vector.load %arg4[%c0_5, %c0_6] : memref<8x16xf32, #tpu.memory_space<vmem>>, vector<8x16xf32>
    tpu.vector_store %arg4[%c0_5, %c0_6], %5 {strides = array<i32>} : memref<8x16xf32, #tpu.memory_space<vmem>>, vector<8x16xf32>,
    return
  }
  func.func @transform_0(%arg0: i32) -> (i32, i32) {
    %c0_i32 = arith.constant 0 : i32
    %c0_i32_0 = arith.constant 0 : i32
    return %arg0, %c0_i32 : i32, i32
  }
  func.func @transform_1(%arg0: i32) -> (i32, i32) {
    %c0_i32 = arith.constant 0 : i32
    %c0_i32_0 = arith.constant 0 : i32
    %c0_i32_1 = arith.constant 0 : i32
    return %c0_i32, %c0_i32_0 : i32, i32
  }
  func.func @transform_2(%arg0: i32) -> (i32, i32) {
    %c0_i32 = arith.constant 0 : i32
    %c0_i32_0 = arith.constant 0 : i32
    %c0_i32_1 = arith.constant 0 : i32
    return %c0_i32, %c0_i32_0 : i32, i32
  }
  func.func @transform_3(%arg0: i32) -> (i32, i32) {
    %c0_i32 = arith.constant 0 : i32
    %c0_i32_0 = arith.constant 0 : i32
    return %arg0, %c0_i32 : i32, i32
  }
}

</mosaic_0001>

<llo_original>
// kernel: tpu_custom_call.1
$region0: #{tpu_custom_call.1}
  #allocation0 [shape = 'u32[]', space=smem, size = 0x4, offset = 0x4, fixed_abs, tag = 'smem constant byte address 0x4 - core index']
  #allocation1 [shape = 'u32[144,128]{1,0:T(1,128)}', space=vmem, size = 0x12000, scoped, tag = 'internal scratch']
  %s0 = inlined_call_operand.vmem [shape: f32[8,32], index: 0, kind: input, shape index: {}]
  %s1 = inlined_call_operand.vmem [shape: f32[32,16], index: 1, kind: input, shape index: {}]
  %s2 = inlined_call_operand.vmem [shape: f32[1,16], index: 2, kind: input, shape index: {}]
  %s3 = inlined_call_operand.hbm [shape: f32[8,16], index: 3, kind: output, shape index: {}]
  %s4 = sld [smem:[#allocation0]]
  $region22: #{tpu_custom_call.1} parent=0
    _
  %s6 = ssub.s32 1, %s4
  %s7 = scalar_select 0, %s6, %s4
  $region1: #{tpu_custom_call.1} parent=0
    #allocation2 [shape = 'u8[4096]{0}', space=vmem, size = 0x1000, scoped, tag = 'output window, operand 0, single buffered']
    #allocation3 [shape = 's32[1]{0}', space=sflag, size = 0x4, scoped, tag = 'scoped memory for tpu_custom_call.1']
    %8 = vsyncpa [#allocation3], 0
    // Predicated region
    $region2: #{tpu_custom_call.1} parent=1 // pred_check
      _
    $region3: #{tpu_custom_call.1} parent=1 // pred_check_branch
      %10 = sbr.rel (0) target = $region5
    $region4: #{tpu_custom_call.1} parent=1 // pred_region
      _
    $region5: #{tpu_custom_call.1} parent=1 // pred_fallthru
      _
    // Predicated region
    $region6: #{tpu_custom_call.1} parent=1 // pred_check
      _
    $region7: #{tpu_custom_call.1} parent=1 // pred_check_branch
      %12 = sbr.rel (0) target = $region9
    $region8: #{tpu_custom_call.1} parent=1 // pred_region
      _
    $region9: #{tpu_custom_call.1} parent=1 // pred_fallthru
      _
    // Predicated region
    $region10: #{tpu_custom_call.1} parent=1 // pred_check
      _
    $region11: #{tpu_custom_call.1} parent=1 // pred_check_branch
      %14 = sbr.rel (0) target = $region13
    $region12: #{tpu_custom_call.1} parent=1 // pred_region
      _
    $region13: #{tpu_custom_call.1} parent=1 // pred_fallthru
      _
    %v15 = vld [vmem:[%s0] sm:$0xff]
    %v16 = vld [vmem:[%s1] sm:$0xff]
    %v17 = vld [vmem:[%s1 + $0x8] sm:$0xff]
    %v18 = vld [vmem:[%s1 + $0x10] sm:$0xff]
    %v19 = vld [vmem:[%s1 + $0x18] sm:$0xff]
    %v20 = vld [vmem:[%s2] sm:$0x1]
    %v22 = vlaneseq
    %v23 = vshrl.u32 %v22, 7
    %v24 = vsub.s32 0, %v23
    %v25 = vrot.slane %v20, %v24
    %vm27 = vcmask 261120
    %v29 = vsel %vm27, %v15, 0
    %31 = vmatprep.subr.mxu0 0.0
    %32 = vmatpush1.msra.mxu0 0.0
    %33 = vmatprep.subr.mxu0 0.0
    %34 = vmatpush1.msra.mxu0 0.0
    %35 = vmatprep.subr.mxu0 0.0
    %36 = vmatpush1.msra.mxu0 0.0
    %37 = vmatprep.subr.mxu0 0.0
    %38 = vmatpush1.msra.mxu0 0.0
    %39 = vmatprep.subr.mxu0 0.0
    %40 = vmatpush1.msra.mxu0 0.0
    %41 = vmatprep.subr.mxu0 0.0
    %42 = vmatpush1.msra.mxu0 0.0
    %43 = vmatprep.subr.mxu0 0.0
    %44 = vmatpush1.msra.mxu0 0.0
    %45 = vmatprep.subr.mxu0 0.0
    %46 = vmatpush1.msra.mxu0 0.0
    %47 = vmatprep.subr.mxu0 0.0
    %48 = vmatpush1.msra.mxu0 0.0
    %49 = vmatprep.subr.mxu0 0.0
    %50 = vmatpush1.msra.mxu0 0.0
    %51 = vmatprep.subr.mxu0 0.0
    %52 = vmatpush1.msra.mxu0 0.0
    %53 = vmatprep.subr.mxu0 0.0
    %54 = vmatpush1.msra.mxu0 0.0
    %55 = vmatprep.subr.mxu0 0.0
    %56 = vmatpush1.msra.mxu0 %v19
    %57 = vmatprep.subr.mxu0 0.0
    %58 = vmatpush1.msra.mxu0 %v18
    %59 = vmatprep.subr.mxu0 0.0
    %60 = vmatpush1.msra.mxu0 %v17
    %61 = vmatprep.subr.mxu0 0.0
    %62 = vmatpush1.msra.mxu0 %v16
    %63 = vmatprep.subr.mxu0 0.0
    %64 = vmatpush2.msra.mxu0 0.0
    %65 = vmatprep.subr.mxu0 0.0
    %66 = vmatpush2.msra.mxu0 0.0
    %67 = vmatprep.subr.mxu0 0.0
    %68 = vmatpush2.msra.mxu0 0.0
    %69 = vmatprep.subr.mxu0 0.0
    %70 = vmatpush2.msra.mxu0 0.0
    %71 = vmatprep.subr.mxu0 0.0
    %72 = vmatpush2.msra.mxu0 0.0
    %73 = vmatprep.subr.mxu0 0.0
    %74 = vmatpush2.msra.mxu0 0.0
    %75 = vmatprep.subr.mxu0 0.0
    %76 = vmatpush2.msra.mxu0 0.0
    %77 = vmatprep.subr.mxu0 0.0
    %78 = vmatpush2.msra.mxu0 0.0
    %79 = vmatprep.subr.mxu0 0.0
    %80 = vmatpush2.msra.mxu0 0.0
    %81 = vmatprep.subr.mxu0 0.0
    %82 = vmatpush2.msra.mxu0 0.0
    %83 = vmatprep.subr.mxu0 0.0
    %84 = vmatpush2.msra.mxu0 0.0
    %85 = vmatprep.subr.mxu0 0.0
    %86 = vmatpush2.msra.mxu0 0.0
    %87 = vmatprep.subr.mxu0 0.0
    %88 = vmatpush2.msra.mxu0 0.0
    %89 = vmatprep.subr.mxu0 0.0
    %90 = vmatpush2.msra.mxu0 0.0
    %91 = vmatprep.subr.mxu0 0.0
    %92 = vmatpush2.msra.mxu0 0.0
    %93 = vmatprep.subr.mxu0 0.0
    %94 = vmatpush2.msra.mxu0 0.0
    %95 = vmatprep.mubr.f32.mxu0 0.0
    %96 = vmatmul.mubr.f32.gmra.mxu0 %v29
    %v97 = vpop.f32.mrf.mxu0
    %v98 = vadd.f32 %v25, %v97
    %v99 = vpop.f32.mrf.mxu0
    %100 = vdwg.mxu0
    %vm101 = vcmask 130048
    %102 = vst.msk [vmem:[#allocation2] sm:$0xff] %vm101, %v98
    // Predicated region
    $region14: #{tpu_custom_call.1} parent=1 // pred_check
      _
    $region15: #{tpu_custom_call.1} parent=1 // pred_check_branch
      %104 = sbr.rel (0) target = $region17
    $region16: #{tpu_custom_call.1} parent=1 // pred_region
      %s106 = ssub.s32 128, 128
      %107 = vsyncadd [#allocation3], %s106
      %s109 = sshll.u32 [#allocation2], 4
      %s110 = int_to_ptr.vmem [resolvable:$true] %s109
      %112 = dma.vmem_to_hbm [thread:$0]  %s110, 128, %s3, [#allocation3]
    $region17: #{tpu_custom_call.1} parent=1 // pred_fallthru
      _
    // Predicated region
    $region18: #{tpu_custom_call.1} parent=1 // pred_check
      _
    $region19: #{tpu_custom_call.1} parent=1 // pred_check_branch
      %114 = sbr.rel (0) target = $region21
    $region20: #{tpu_custom_call.1} parent=1 // pred_region
      %115 = dma.done [#allocation3], 128
    $region21: #{tpu_custom_call.1} parent=1 // pred_fallthru
      _
    %116 = vsyncpa [#allocation3], 1

</llo_original>
